<compile_context>
chip_gen: v7x
topology: tpu7x:2x2x1
jax: 0.10.0
libtpu: 0.0.40
codegen_flags: <defaults>
</compile_context>

<pallas_src>
import functools

import jax
import jax.numpy as jnp
from jax.experimental import pallas as pl
from jax.experimental.pallas import tpu as pltpu


def _round_up(n, m):
    return ((n + m - 1) // m) * m


def _tv_kernel(x_ref, h_ref, w_ref, *, H, W):
    HW = H * W
    x = x_ref[...]                                   # (Pt, H*W), native dtype

    # Neighbor "one row down" (flat index j+W) and "one to the right" (j+1)
    # via XLU lane rotation (positive shifts == -W / -1 mod HW).
    x_down = pltpu.roll(x, shift=HW - W, axis=1)     # x[(j + W) mod HW]
    x_right = pltpu.roll(x, shift=HW - 1, axis=1)    # x[(j + 1) mod HW]

    j = jax.lax.broadcasted_iota(jnp.int32, x.shape, 1)
    mask_h = j < (H - 1) * W                         # drop wrapped last row
    mask_w = (j % W) != (W - 1)                      # drop wrapped last col

    dh = jnp.where(mask_h, (x_down - x).astype(jnp.float32), 0.0)
    dw = jnp.where(mask_w, (x_right - x).astype(jnp.float32), 0.0)

    # Per-program partial sums (no cross-step accumulator => parallel-safe).
    h_sum = jnp.sum(dh * dh)
    w_sum = jnp.sum(dw * dw)
    h_ref[...] = jnp.broadcast_to(h_sum, h_ref.shape).astype(jnp.float32)
    w_ref[...] = jnp.broadcast_to(w_sum, w_ref.shape).astype(jnp.float32)


def tv_loss(x, tv_loss_weight=1.0, *, target_block_bytes=4 * 1024 * 1024):
    """Pallas implementation of TVLoss.forward for NCHW input x."""
    B, C, H, W = x.shape
    HW = H * W
    P = B * C

    # Lane-dense view: each plane is one row, its H*W pixels on the lane axis.
    x2 = x.reshape(P, HW)

    # Plane-tile size: multiple of 8 (sublane alignment), sized so the
    # double-buffered input block stays well inside scoped VMEM everywhere.
    plane_bytes = HW * x.dtype.itemsize
    p_round = _round_up(P, 8)
    pt = max(8, (target_block_bytes // max(plane_bytes, 1)) // 8 * 8)
    pt = min(pt, p_round)
    p_pad = _round_up(P, pt)
    if p_pad != P:
        # Zero planes contribute exactly 0 to both sums.
        x2 = jnp.concatenate(
            [x2, jnp.zeros((p_pad - P, HW), dtype=x2.dtype)], axis=0)
    num_tiles = p_pad // pt

    kernel = functools.partial(_tv_kernel, H=H, W=W)
    h_part, w_part = pl.pallas_call(
        kernel,
        out_shape=(jax.ShapeDtypeStruct((num_tiles, 8, 128), jnp.float32),
                   jax.ShapeDtypeStruct((num_tiles, 8, 128), jnp.float32)),
        grid=(num_tiles,),
        in_specs=[pl.BlockSpec((pt, HW), lambda p: (p, 0))],
        out_specs=(pl.BlockSpec((1, 8, 128), lambda p: (p, 0, 0)),
                   pl.BlockSpec((1, 8, 128), lambda p: (p, 0, 0))),
        compiler_params=pltpu.CompilerParams(
            dimension_semantics=("parallel",),
            vmem_limit_bytes=32 * 1024 * 1024),
    )(x2)

    h_tv = jnp.sum(h_part[:, 0, 0])
    w_tv = jnp.sum(w_part[:, 0, 0])
    count_h = (H - 1) * W
    count_w = H * (W - 1)
    return (tv_loss_weight * 2.0
            * (h_tv / count_h + w_tv / count_w) / B)


def _tv_loss_ref(x, tv_loss_weight=1.0):
    """Pure-JAX reference matching the PyTorch forward exactly."""
    B, C, H, W = x.shape
    xf = x.astype(jnp.float32)
    count_h = (H - 1) * W
    count_w = H * (W - 1)
    h_tv = jnp.sum((xf[:, :, 1:, :] - xf[:, :, :H - 1, :]) ** 2)
    w_tv = jnp.sum((xf[:, :, :, 1:] - xf[:, :, :, :W - 1]) ** 2)
    return tv_loss_weight * 2.0 * (h_tv / count_h + w_tv / count_w) / B


if __name__ == "__main__":
    key = jax.random.PRNGKey(0)
    # small NCHW input consistent with the module's conv-style input
    x = jax.random.normal(key, (2, 4, 16, 16), dtype=jnp.float32)

    out = tv_loss(x, tv_loss_weight=1.0)
    out = jax.block_until_ready(out)

    ref = _tv_loss_ref(x, tv_loss_weight=1.0)
    assert jnp.allclose(out, ref, rtol=1e-4, atol=1e-5), (out, ref)

    print("KERNEL_OK")
</pallas_src>

<mosaic_0001>
module attributes {stable_mosaic.version = 11 : i64} {
  func.func @_tv_kernel(%arg0: i32, %arg1: memref<8x256xf32, #tpu.memory_space<vmem>>, %arg2: memref<1x8x128xf32, #tpu.memory_space<vmem>>, %arg3: memref<1x8x128xf32, #tpu.memory_space<vmem>>) attributes {dimension_semantics = [#tpu.dimension_semantics<parallel>], iteration_bounds = array<i64: 1>, scalar_prefetch = 0 : i64, scratch_operands = 0 : i64, tpu.core_type = #tpu.core_type<tc>, window_params = [{transform_indices = @transform_0, window_bounds = array<i64: 8, 256>}, {transform_indices = @transform_1, window_bounds = array<i64: 1, 8, 128>}, {transform_indices = @transform_2, window_bounds = array<i64: 1, 8, 128>}]} {
    %c0 = arith.constant 0 : index
    %c0_0 = arith.constant 0 : index
    %0 = vector.load %arg1[%c0, %c0_0] : memref<8x256xf32, #tpu.memory_space<vmem>>, vector<8x256xf32>
    %c240_i32 = arith.constant 240 : i32
    %1 = tpu.dynamic_rotate %0 by %c240_i32 dim 1 : vector<8x256xf32>, i32 -> vector<8x256xf32>
    %c255_i32 = arith.constant 255 : i32
    %2 = tpu.dynamic_rotate %0 by %c255_i32 dim 1 : vector<8x256xf32>, i32 -> vector<8x256xf32>
    %3 = tpu.iota {dimensions = array<i32: 1>} : vector<8x256xi32>
    %c240_i32_1 = arith.constant 240 : i32
    %4 = vector.broadcast %c240_i32_1 : i32 to vector<8x256xi32>
    %5 = arith.cmpi slt, %3, %4 : vector<8x256xi32>
    %c16_i32 = arith.constant 16 : i32
    %c0_i32 = arith.constant 0 : i32
    %6 = arith.cmpi eq, %c16_i32, %c0_i32 : i32
    %c1_i32 = arith.constant 1 : i32
    %7 = arith.select %6, %c1_i32, %c16_i32 : i32
    %8 = vector.broadcast %7 : i32 to vector<8x256xi32>
    %9 = arith.remsi %3, %8 : vector<8x256xi32>
    %c0_i32_2 = arith.constant 0 : i32
    %10 = vector.broadcast %c0_i32_2 : i32 to vector<8x256xi32>
    %11 = arith.cmpi ne, %9, %10 : vector<8x256xi32>
    %c0_i32_3 = arith.constant 0 : i32
    %12 = vector.broadcast %c0_i32_3 : i32 to vector<8x256xi32>
    %13 = arith.cmpi slt, %9, %12 : vector<8x256xi32>
    %c0_i32_4 = arith.constant 0 : i32
    %14 = arith.cmpi slt, %7, %c0_i32_4 : i32
    %15 = vector.broadcast %14 : i1 to vector<8x256xi1>
    %16 = vector.broadcast %15 : vector<8x256xi1> to vector<8x256xi1>
    %17 = arith.xori %13, %16 : vector<8x256xi1>
    %18 = arith.andi %17, %11 : vector<8x256xi1>
    %19 = vector.broadcast %7 : i32 to vector<8x256xi32>
    %20 = arith.addi %9, %19 : vector<8x256xi32>
    %21 = arith.select %18, %20, %9 : vector<8x256xi1>, vector<8x256xi32>
    %c15_i32 = arith.constant 15 : i32
    %22 = vector.broadcast %c15_i32 : i32 to vector<8x256xi32>
    %23 = arith.cmpi ne, %21, %22 : vector<8x256xi32>
    %24 = arith.subf %1, %0 : vector<8x256xf32>
    %cst = arith.constant 0.000000e+00 : f32
    %25 = vector.broadcast %cst : f32 to vector<8x256xf32>
    %26 = arith.select %5, %24, %25 : vector<8x256xi1>, vector<8x256xf32>
    %27 = arith.subf %2, %0 : vector<8x256xf32>
    %cst_5 = arith.constant 0.000000e+00 : f32
    %28 = vector.broadcast %cst_5 : f32 to vector<8x256xf32>
    %29 = arith.select %23, %27, %28 : vector<8x256xi1>, vector<8x256xf32>
    %30 = arith.mulf %26, %26 : vector<8x256xf32>
    %31 = vector.shape_cast %30 : vector<8x256xf32> to vector<1x8x256xf32>
    %cst_6 = arith.constant dense<0.000000e+00> : vector<1xf32>
    %32 = vector.multi_reduction <add>, %31, %cst_6 [1, 2] : vector<1x8x256xf32> to vector<1xf32>
    %33 = vector.shape_cast %32 : vector<1xf32> to vector<1x1x1xf32>
    %34 = vector.extract %33[0, 0, 0] : f32 from vector<1x1x1xf32>
    %35 = arith.mulf %29, %29 : vector<8x256xf32>
    %36 = vector.shape_cast %35 : vector<8x256xf32> to vector<1x8x256xf32>
    %cst_7 = arith.constant dense<0.000000e+00> : vector<1xf32>
    %37 = vector.multi_reduction <add>, %36, %cst_7 [1, 2] : vector<1x8x256xf32> to vector<1xf32>
    %38 = vector.shape_cast %37 : vector<1xf32> to vector<1x1x1xf32>
    %39 = vector.extract %38[0, 0, 0] : f32 from vector<1x1x1xf32>
    %40 = vector.broadcast %34 : f32 to vector<1x8x128xf32>
    %c0_8 = arith.constant 0 : index
    %c0_9 = arith.constant 0 : index
    %c0_10 = arith.constant 0 : index
    %41 = vector.load %arg2[%c0_8, %c0_9, %c0_10] : memref<1x8x128xf32, #tpu.memory_space<vmem>>, vector<1x8x128xf32>
    tpu.vector_store %arg2[%c0_8, %c0_9, %c0_10], %40 {strides = array<i32>} : memref<1x8x128xf32, #tpu.memory_space<vmem>>, vector<1x8x128xf32>,
    %42 = vector.broadcast %39 : f32 to vector<1x8x128xf32>
    %c0_11 = arith.constant 0 : index
    %c0_12 = arith.constant 0 : index
    %c0_13 = arith.constant 0 : index
    %43 = vector.load %arg3[%c0_11, %c0_12, %c0_13] : memref<1x8x128xf32, #tpu.memory_space<vmem>>, vector<1x8x128xf32>
    tpu.vector_store %arg3[%c0_11, %c0_12, %c0_13], %42 {strides = array<i32>} : memref<1x8x128xf32, #tpu.memory_space<vmem>>, vector<1x8x128xf32>,
    return
  }
  func.func @transform_0(%arg0: i32) -> (i32, i32) {
    %c0_i32 = arith.constant 0 : i32
    %c0_i32_0 = arith.constant 0 : i32
    return %arg0, %c0_i32 : i32, i32
  }
  func.func @transform_1(%arg0: i32) -> (i32, i32, i32) {
    %c0_i32 = arith.constant 0 : i32
    %c0_i32_0 = arith.constant 0 : i32
    %c0_i32_1 = arith.constant 0 : i32
    return %arg0, %c0_i32, %c0_i32_0 : i32, i32, i32
  }
  func.func @transform_2(%arg0: i32) -> (i32, i32, i32) {
    %c0_i32 = arith.constant 0 : i32
    %c0_i32_0 = arith.constant 0 : i32
    %c0_i32_1 = arith.constant 0 : i32
    return %arg0, %c0_i32, %c0_i32_0 : i32, i32, i32
  }
}

</mosaic_0001>

<llo_original>
// kernel: tpu_custom_call.1
$region0: #{tpu_custom_call.1}
  #allocation0 [shape = 'u32[]', space=smem, size = 0x4, offset = 0x4, fixed_abs, tag = 'smem constant byte address 0x4 - core index']
  #allocation1 [shape = 'u32[144,128]{1,0:T(1,128)}', space=vmem, size = 0x12000, scoped, tag = 'internal scratch']
  %s0 = inlined_call_operand.hbm [shape: f32[8,256], index: 0, kind: input, shape index: {}]
  %s1 = inlined_call_operand.hbm [shape: f32[1,8,128], index: 1, kind: output, shape index: {0}]
  %s2 = inlined_call_operand.hbm [shape: f32[1,8,128], index: 2, kind: output, shape index: {1}]
  %3 = xla_tuple %s1, %s2
  %s4 = sld [smem:[#allocation0]]
  $region26: #{tpu_custom_call.1} parent=0
    _
  %s6 = ssub.s32 1, %s4
  %s7 = scalar_select 0, %s6, %s4
  $region1: #{tpu_custom_call.1} parent=0
    #allocation2 [shape = 'u8[8192]{0}', space=vmem, size = 0x2000, scoped, tag = 'input window, operand 0, single buffered']
    #allocation3 [shape = 's32[1]{0}', space=sflag, size = 0x4, scoped, tag = 'scoped memory for tpu_custom_call.1']
    #allocation4 [shape = 's32[1]{0}', space=sflag, size = 0x4, scoped, tag = 'scoped memory for tpu_custom_call.1']
    #allocation5 [shape = 'u8[4096]{0}', space=vmem, size = 0x1000, scoped, tag = 'output window, operand 0, single buffered']
    #allocation6 [shape = 'u8[4096]{0}', space=vmem, size = 0x1000, scoped, tag = 'output window, operand 1, single buffered']
    #allocation7 [shape = 's32[1]{0}', space=sflag, size = 0x4, scoped, tag = 'scoped memory for tpu_custom_call.1']
    %8 = vsyncpa [#allocation3], 0
    %9 = vsyncpa [#allocation4], 0
    %10 = vsyncpa [#allocation7], 0
    // Predicated region
    $region2: #{tpu_custom_call.1} parent=1 // pred_check
      _
    $region3: #{tpu_custom_call.1} parent=1 // pred_check_branch
      %12 = sbr.rel (0) target = $region5
    $region4: #{tpu_custom_call.1} parent=1 // pred_region
      %s14 = ssub.s32 256, 256
      %15 = vsyncadd [#allocation3], %s14
      %s17 = sshll.u32 [#allocation2], 4
      %s18 = int_to_ptr.vmem [resolvable:$true] %s17
      %20 = dma.hbm_to_vmem [thread:$0]  %s0, 256, %s18, [#allocation3]
    $region5: #{tpu_custom_call.1} parent=1 // pred_fallthru
      _
    // Predicated region
    $region6: #{tpu_custom_call.1} parent=1 // pred_check
      _
    $region7: #{tpu_custom_call.1} parent=1 // pred_check_branch
      %22 = sbr.rel (0) target = $region9
    $region8: #{tpu_custom_call.1} parent=1 // pred_region
      %23 = dma.done [#allocation3], 256
    $region9: #{tpu_custom_call.1} parent=1 // pred_fallthru
      _
    %v24 = vld [vmem:[#allocation2] sm:$0xff]
    %v25 = vld [vmem:[#allocation2 + $0x8] sm:$0xff]
    %26 = vrot.lane.b32.xlu0 %v24, 112
    %v27 = vpop.permute.xlu0 %26
    %28 = vrot.lane.b32.xlu0 %v25, 112
    %v29 = vpop.permute.xlu0 %28
    %v30 = vlaneseq
    %v31 = vand.u32 %v30, 127
    %vm32 = vcmp.lt.s32.totalorder %v31, 112
    %v33 = vsel %vm32, %v27, %v29
    %v34 = vsel %vm32, %v29, %v27
    %35 = vrot.lane.b32.xlu0 %v24, 127
    %v36 = vpop.permute.xlu0 %35
    %37 = vrot.lane.b32.xlu0 %v25, 127
    %v38 = vpop.permute.xlu0 %37
    %vm39 = vcmp.lt.s32.totalorder %v31, 127
    %v40 = vsel %vm39, %v36, %v38
    %v41 = vsel %vm39, %v38, %v36
    %v42 = vadd.s32 %v31, 128
    %vm43 = vcmp.lt.s32.totalorder %v31, 240
    %vm44 = vcmp.lt.s32.totalorder %v42, 240
    %vm45 = vcmp.lt.s32.totalorder %v31, 0
    %v46 = vsub.s32 0, %v31
    %v47 = vsel %vm45, %v46, %v31
    %v48 = vshrl.u32 %v47, 4
    %v49 = vand.u32 %v47, 15
    %v50 = vsub.s32 0, %v49
    %v51 = vsel %vm45, %v50, %v49
    %vm52 = vcmp.lt.s32.totalorder %v42, 0
    %v53 = vsub.s32 0, %v42
    %v54 = vsel %vm52, %v53, %v42
    %v55 = vshrl.u32 %v54, 4
    %v56 = vand.u32 %v54, 15
    %v57 = vsub.s32 0, %v56
    %v58 = vsel %vm52, %v57, %v56
    %vm59 = vcmp.ne.s32.totalorder %v51, 0
    %vm60 = vcmp.ne.s32.totalorder %v58, 0
    %vm61 = vcmp.lt.s32.totalorder %v51, 0
    %vm62 = vcmp.lt.s32.totalorder %v58, 0
    %vm63 = vmand %vm61, %vm59
    %vm64 = vmand %vm62, %vm60
    %v65 = vadd.s32 %v51, 16
    %v66 = vadd.s32 %v58, 16
    %v67 = vsel %vm63, %v65, %v51
    %v68 = vsel %vm64, %v66, %v58
    %vm69 = vcmp.ne.s32.totalorder %v67, 15
    %vm70 = vcmp.ne.s32.totalorder %v68, 15
    %v71 = vsub.f32 %v33, %v24
    %v72 = vsub.f32 %v34, %v25
    %v73 = vsel %vm43, %v71, 0.0
    %v74 = vsel %vm44, %v72, 0.0
    %v75 = vsub.f32 %v40, %v24
    %v76 = vsub.f32 %v41, %v25
    %v77 = vsel %vm69, %v75, 0.0
    %v78 = vsel %vm70, %v76, 0.0
    %v79 = vmul.f32 %v73, %v73
    %v80 = vmul.f32 %v74, %v74
    %v81 = vadd.f32 %v79, %v80
    %82 = vadd.xlane.f32.xlu0 %v81
    %v83 = vpop.xlane.xlu0 %82
    %v84 = vrot.slane %v83, 4
    %v85 = vadd.f32 %v83, %v84
    %v86 = vrot.slane %v85, 2
    %v87 = vadd.f32 %v85, %v86
    %v88 = vrot.slane %v87, 1
    %v89 = vadd.f32 %v87, %v88
    %s90 = vtos %v89
    %v91 = vmul.f32 %v77, %v77
    %v92 = vmul.f32 %v78, %v78
    %v93 = vadd.f32 %v91, %v92
    %94 = vadd.xlane.f32.xlu0 %v93
    %v95 = vpop.xlane.xlu0 %94
    %v96 = vrot.slane %v95, 4
    %v97 = vadd.f32 %v95, %v96
    %v98 = vrot.slane %v97, 2
    %v99 = vadd.f32 %v97, %v98
    %v100 = vrot.slane %v99, 1
    %v101 = vadd.f32 %v99, %v100
    %s102 = vtos %v101
    %v103 = vstv %s90
    %104 = vst [vmem:[#allocation5] sm:$0xff] %v103
    %v105 = vstv %s102
    %106 = vst [vmem:[#allocation6] sm:$0xff] %v105
    // Predicated region
    $region10: #{tpu_custom_call.1} parent=1 // pred_check
      _
    $region11: #{tpu_custom_call.1} parent=1 // pred_check_branch
      %108 = sbr.rel (0) target = $region13
    $region12: #{tpu_custom_call.1} parent=1 // pred_region
      %s110 = ssub.s32 128, 128
      %111 = vsyncadd [#allocation4], %s110
      %s113 = sshll.u32 [#allocation5], 4
      %s114 = int_to_ptr.vmem [resolvable:$true] %s113
      %116 = dma.vmem_to_hbm [thread:$0]  %s114, 128, %s1, [#allocation4]
    $region13: #{tpu_custom_call.1} parent=1 // pred_fallthru
      _
    // Predicated region
    $region14: #{tpu_custom_call.1} parent=1 // pred_check
      _
    $region15: #{tpu_custom_call.1} parent=1 // pred_check_branch
      %118 = sbr.rel (0) target = $region17
    $region16: #{tpu_custom_call.1} parent=1 // pred_region
      %s120 = ssub.s32 128, 128
      %121 = vsyncadd [#allocation7], %s120
      %s123 = sshll.u32 [#allocation6], 4
      %s124 = int_to_ptr.vmem [resolvable:$true] %s123
      %126 = dma.vmem_to_hbm [thread:$0]  %s124, 128, %s2, [#allocation7]
    $region17: #{tpu_custom_call.1} parent=1 // pred_fallthru
      _
    // Predicated region
    $region18: #{tpu_custom_call.1} parent=1 // pred_check
      _
    $region19: #{tpu_custom_call.1} parent=1 // pred_check_branch
      %128 = sbr.rel (0) target = $region21
    $region20: #{tpu_custom_call.1} parent=1 // pred_region
      %129 = dma.done [#allocation4], 128
    $region21: #{tpu_custom_call.1} parent=1 // pred_fallthru
      _
    // Predicated region
    $region22: #{tpu_custom_call.1} parent=1 // pred_check
      _
    $region23: #{tpu_custom_call.1} parent=1 // pred_check_branch
      %131 = sbr.rel (0) target = $region25
    $region24: #{tpu_custom_call.1} parent=1 // pred_region
      %132 = dma.done [#allocation7], 128
    $region25: #{tpu_custom_call.1} parent=1 // pred_fallthru
      _
    %133 = vsyncpa [#allocation3], 1
    %134 = vsyncpa [#allocation4], 1
    %135 = vsyncpa [#allocation7], 1

</llo_original>
